<compile_context>
chip_gen: v7x
topology: tpu7x:2x2x1
jax: 0.10.0
libtpu: 0.0.40
codegen_flags: <defaults>
</compile_context>

<pallas_src>
import functools

import jax
import jax.numpy as jnp
from jax.experimental import pallas as pl
from jax.experimental.pallas import tpu as pltpu

MAX_TN = 32768       # absolute per-step lane cap (~1 MiB / stream at TB=8)
_SUBLANES = 8


def _ceil128(x):
    return ((x + 127) // 128) * 128


def _vmem_budget_bytes():
    """Bytes we allow the double-buffered working set to occupy (~1/3 VMEM)."""
    cap = 64 * 1024 * 1024  # conservative fallback (v7x per-TC physical VMEM)
    try:
        info = pltpu.get_tpu_info()
        cap = int(getattr(info, "vmem_capacity_bytes", cap)) or cap
    except Exception:
        pass
    return min(cap // 3, 32 * 1024 * 1024)


def _quats_to_Rs(quats):
    """Quaternion -> rotation matrix (n, 3, 3); matches the torch `Rs` property."""
    q = quats.astype(jnp.float32)
    q = q / jnp.linalg.norm(q, axis=1, keepdims=True)
    qr, qi, qj, qk = q[:, 0], q[:, 1], q[:, 2], q[:, 3]
    row0 = jnp.stack([0.5 - (qj**2 + qk**2), qi * qj - qr * qk, qi * qk + qr * qj], -1)
    row1 = jnp.stack([qi * qj + qr * qk, 0.5 - (qi**2 + qk**2), qj * qk - qr * qi], -1)
    row2 = jnp.stack([qi * qk - qr * qj, qj * qk + qr * qi, 0.5 - (qi**2 + qj**2)], -1)
    return 2.0 * jnp.stack([row0, row1, row2], axis=-2)  # (n, 3, 3)


def _pinhole_kernel(m_ref, u_ref, v_ref, z_ref, o_ref):
    # m_ref: (TB, 12) = [M00..M22, tx, ty, tz] per camera row, M = R@diag(1/fx,-1/fy,-1)
    # u_ref/v_ref/z_ref: (TB, TN) points (batch rows on sublanes, points on lanes)
    # o_ref: (3, TB, TN) fused output (x, y, w planes)
    m = m_ref[...]
    u = u_ref[...]
    v = v_ref[...]
    z = z_ref[...]

    def col(j):  # per-camera scalar column, broadcasts over lanes
        return m[:, j:j + 1]  # (TB, 1)

    dt = o_ref.dtype
    # points_3d = R @ backproject(u, v, z) + t, refactored as z*(c0*u+c1*v+c2)+t
    o_ref[0, :, :] = (z * (col(0) * u + col(1) * v + col(2)) + col(9)).astype(dt)
    o_ref[1, :, :] = (z * (col(3) * u + col(4) * v + col(5)) + col(10)).astype(dt)
    o_ref[2, :, :] = (z * (col(6) * u + col(7) * v + col(8)) + col(11)).astype(dt)


@functools.partial(jax.jit, static_argnames=("out_dtype",))
def pinhole_forward_planar(us, vs, zs, fxs, fys, quats, ts, out_dtype=jnp.float32):
    """Kernel-native layout: returns (3, B, P) with no post-kernel interleave."""
    B, P = us.shape

    # ---- per-camera parameter setup (tiny, plain JAX) ----
    Rs = _quats_to_Rs(quats)                       # (B, 3, 3)
    fx = fxs.astype(jnp.float32)[:, None]
    fy = fys.astype(jnp.float32)[:, None]
    M = jnp.stack([Rs[:, :, 0] / fx, -Rs[:, :, 1] / fy, -Rs[:, :, 2]], axis=-1)
    params = jnp.concatenate([M.reshape(B, 9), ts.astype(jnp.float32)], axis=1)  # (B, 12)

    # ---- VMEM-budget-driven tiling ----
    TB = B if B <= _SUBLANES else _SUBLANES
    budget = _vmem_budget_bytes()
    bytes_per_lane = 6 * 2 * TB * 4            # 6 streams x double-buffer x TB rows x f32
    tn_budget = max(128, (budget // bytes_per_lane) // 128 * 128)
    TN = min(_ceil128(P), tn_budget, MAX_TN)
    if B <= TB and P > 128:
        # v7x megacore: keep >= 2 "parallel" grid steps along the point axis
        # so both TensorCores get work when the batch axis collapses to 1 step.
        TN = min(TN, max(128, _ceil128(pl.cdiv(P, 2))))
    grid = (pl.cdiv(B, TB), pl.cdiv(P, TN))    # ragged tails -> partial blocks

    work_bytes = 6 * 2 * TB * TN * 4 + 2 * 8 * 128 * 4   # streams + params table
    vmem_limit = int(max(32 << 20, work_bytes * 3 // 2 + (4 << 20)))

    pt_spec = pl.BlockSpec((TB, TN), lambda bi, pi: (bi, pi))

    return pl.pallas_call(
        _pinhole_kernel,
        out_shape=jax.ShapeDtypeStruct((3, B, P), out_dtype),
        grid=grid,
        in_specs=[
            pl.BlockSpec((TB, 12), lambda bi, pi: (bi, 0)),   # params table
            pt_spec,  # us
            pt_spec,  # vs
            pt_spec,  # zs
        ],
        out_specs=pl.BlockSpec((3, TB, TN), lambda bi, pi: (0, bi, pi)),
        compiler_params=pltpu.CompilerParams(
            dimension_semantics=("parallel", "parallel"),
            vmem_limit_bytes=vmem_limit,
        ),
    )(
        params,
        us.astype(jnp.float32),
        vs.astype(jnp.float32),
        zs.astype(jnp.float32),
    )


@jax.jit
def pinhole_forward(us, vs, zs, fxs, fys, quats, ts):
    """PyTorch-layout forward (ndx=None). us/vs/zs: (B, P). Returns (B, P, 3)."""
    planar = pinhole_forward_planar(us, vs, zs, fxs, fys, quats, ts)
    # Only pay the (B, P, 3) interleave for PyTorch-layout consumers; use
    # pinhole_forward_planar downstream to avoid this extra HBM pass.
    return jnp.moveaxis(planar, 0, -1)


def pinhole_forward_ndx(us, vs, zs, fxs, fys, quats, ts, ndx):
    """Single-camera path (ndx != None). us/vs/zs: (P,). Returns (P, 3)."""
    P = us.shape[0]
    rows = _SUBLANES
    cols = -(-P // rows)
    pad = rows * cols - P

    def prep(a):  # (P,) -> sublane-dense (8, cols); free reshape, tiny tail pad
        a = a.astype(jnp.float32)
        if pad:
            a = jnp.pad(a, (0, pad))
        return a.reshape(rows, cols)

    planar = pinhole_forward_planar(
        prep(us), prep(vs), prep(zs),
        jnp.broadcast_to(fxs[ndx], (rows,)),
        jnp.broadcast_to(fys[ndx], (rows,)),
        jnp.broadcast_to(quats[ndx], (rows, 4)),
        jnp.broadcast_to(ts[ndx], (rows, 3)),
    )  # (3, rows, cols)
    flat = planar.reshape(3, rows * cols)[:, :P]
    return jnp.moveaxis(flat, 0, -1)  # (P, 3)


def reference_forward(us, vs, zs, fxs, fys, quats, ts):
    """Pure-JAX reference matching the PyTorch module semantics."""
    Rs = _quats_to_Rs(quats)
    x = (us / fxs[:, None]) * zs
    y = -(vs / fys[:, None]) * zs
    w = -zs
    pb = jnp.stack([x, y, w], axis=-1)  # (B, P, 3)
    return jnp.einsum("bij,bpj->bpi", Rs, pb) + ts[:, None, :]


if __name__ == "__main__":
    key = jax.random.PRNGKey(0)
    n = 4        # number of cameras == batch
    P = 200      # num_pts (deliberately not a multiple of 128)
    k1, k2, k3, k4, k5, k6, k7 = jax.random.split(key, 7)

    fxs = 1.0 + 0.5 * jax.random.uniform(k1, (n,), jnp.float32)
    fys = 1.0 + 0.5 * jax.random.uniform(k2, (n,), jnp.float32)
    quats = jax.random.normal(k3, (n, 4), jnp.float32)
    ts = jax.random.normal(k4, (n, 3), jnp.float32)

    us = jax.random.normal(k5, (n, P), jnp.float32)
    vs = jax.random.normal(k6, (n, P), jnp.float32)
    zs = 1.0 + jax.random.uniform(k7, (n, P), jnp.float32)

    ref = reference_forward(us, vs, zs, fxs, fys, quats, ts)

    # PyTorch-layout path
    pts = jax.block_until_ready(pinhole_forward(us, vs, zs, fxs, fys, quats, ts))
    assert pts.shape == (n, P, 3), pts.shape
    assert jnp.allclose(pts, ref, atol=1e-5, rtol=1e-5), float(
        jnp.max(jnp.abs(pts - ref))
    )

    # kernel-native planar path (no interleave pass)
    planar = jax.block_until_ready(
        pinhole_forward_planar(us, vs, zs, fxs, fys, quats, ts)
    )
    assert planar.shape == (3, n, P), planar.shape
    assert jnp.allclose(jnp.moveaxis(planar, 0, -1), ref, atol=1e-5, rtol=1e-5)

    # single-camera (ndx) path
    pts1 = jax.block_until_ready(
        pinhole_forward_ndx(us[1], vs[1], zs[1], fxs, fys, quats, ts, ndx=1)
    )
    assert pts1.shape == (P, 3), pts1.shape
    assert jnp.allclose(pts1, ref[1], atol=1e-5, rtol=1e-5)

    print("KERNEL_OK")
</pallas_src>

<mosaic_0001>
module attributes {stable_mosaic.version = 11 : i64} {
  func.func @_pinhole_kernel(%arg0: i32, %arg1: i32, %arg2: memref<4x12xf32, #tpu.memory_space<vmem>>, %arg3: memref<4x128xf32, #tpu.memory_space<vmem>>, %arg4: memref<4x128xf32, #tpu.memory_space<vmem>>, %arg5: memref<4x128xf32, #tpu.memory_space<vmem>>, %arg6: memref<3x4x128xf32, #tpu.memory_space<vmem>>) attributes {dimension_semantics = [#tpu.dimension_semantics<parallel>, #tpu.dimension_semantics<parallel>], iteration_bounds = array<i64: 1, 2>, scalar_prefetch = 0 : i64, scratch_operands = 0 : i64, tpu.core_type = #tpu.core_type<tc>, window_params = [{transform_indices = @transform_0, window_bounds = array<i64: 4, 12>}, {transform_indices = @transform_1, window_bounds = array<i64: 4, 128>}, {transform_indices = @transform_2, window_bounds = array<i64: 4, 128>}, {transform_indices = @transform_3, window_bounds = array<i64: 4, 128>}, {transform_indices = @transform_4, window_bounds = array<i64: 3, 4, 128>}]} {
    %c0 = arith.constant 0 : index
    %c0_0 = arith.constant 0 : index
    %0 = vector.load %arg2[%c0, %c0_0] : memref<4x12xf32, #tpu.memory_space<vmem>>, vector<4x12xf32>
    %c0_1 = arith.constant 0 : index
    %c0_2 = arith.constant 0 : index
    %1 = vector.load %arg3[%c0_1, %c0_2] : memref<4x128xf32, #tpu.memory_space<vmem>>, vector<4x128xf32>
    %c0_3 = arith.constant 0 : index
    %c0_4 = arith.constant 0 : index
    %2 = vector.load %arg4[%c0_3, %c0_4] : memref<4x128xf32, #tpu.memory_space<vmem>>, vector<4x128xf32>
    %c0_5 = arith.constant 0 : index
    %c0_6 = arith.constant 0 : index
    %3 = vector.load %arg5[%c0_5, %c0_6] : memref<4x128xf32, #tpu.memory_space<vmem>>, vector<4x128xf32>
    %4 = vector.extract_strided_slice %0 {offsets = [0, 0], sizes = [4, 1], strides = [1, 1]} : vector<4x12xf32> to vector<4x1xf32>
    %5 = vector.broadcast %4 : vector<4x1xf32> to vector<4x128xf32>
    %6 = arith.mulf %5, %1 : vector<4x128xf32>
    %7 = vector.extract_strided_slice %0 {offsets = [0, 1], sizes = [4, 1], strides = [1, 1]} : vector<4x12xf32> to vector<4x1xf32>
    %8 = vector.broadcast %7 : vector<4x1xf32> to vector<4x128xf32>
    %9 = arith.mulf %8, %2 : vector<4x128xf32>
    %10 = arith.addf %6, %9 : vector<4x128xf32>
    %11 = vector.extract_strided_slice %0 {offsets = [0, 2], sizes = [4, 1], strides = [1, 1]} : vector<4x12xf32> to vector<4x1xf32>
    %12 = vector.broadcast %11 : vector<4x1xf32> to vector<4x128xf32>
    %13 = arith.addf %10, %12 : vector<4x128xf32>
    %14 = arith.mulf %3, %13 : vector<4x128xf32>
    %15 = vector.extract_strided_slice %0 {offsets = [0, 9], sizes = [4, 1], strides = [1, 1]} : vector<4x12xf32> to vector<4x1xf32>
    %16 = vector.broadcast %15 : vector<4x1xf32> to vector<4x128xf32>
    %17 = arith.addf %14, %16 : vector<4x128xf32>
    %c0_7 = arith.constant 0 : index
    %c0_8 = arith.constant 0 : index
    %c0_9 = arith.constant 0 : index
    %18 = vector.load %arg6[%c0_7, %c0_8, %c0_9] : memref<3x4x128xf32, #tpu.memory_space<vmem>>, vector<1x4x128xf32>
    %19 = vector.shape_cast %18 : vector<1x4x128xf32> to vector<4x128xf32>
    %20 = vector.shape_cast %17 : vector<4x128xf32> to vector<1x4x128xf32>
    tpu.vector_store %arg6[%c0_7, %c0_8, %c0_9], %20 {strides = array<i32>} : memref<3x4x128xf32, #tpu.memory_space<vmem>>, vector<1x4x128xf32>,
    %21 = vector.extract_strided_slice %0 {offsets = [0, 3], sizes = [4, 1], strides = [1, 1]} : vector<4x12xf32> to vector<4x1xf32>
    %22 = vector.broadcast %21 : vector<4x1xf32> to vector<4x128xf32>
    %23 = arith.mulf %22, %1 : vector<4x128xf32>
    %24 = vector.extract_strided_slice %0 {offsets = [0, 4], sizes = [4, 1], strides = [1, 1]} : vector<4x12xf32> to vector<4x1xf32>
    %25 = vector.broadcast %24 : vector<4x1xf32> to vector<4x128xf32>
    %26 = arith.mulf %25, %2 : vector<4x128xf32>
    %27 = arith.addf %23, %26 : vector<4x128xf32>
    %28 = vector.extract_strided_slice %0 {offsets = [0, 5], sizes = [4, 1], strides = [1, 1]} : vector<4x12xf32> to vector<4x1xf32>
    %29 = vector.broadcast %28 : vector<4x1xf32> to vector<4x128xf32>
    %30 = arith.addf %27, %29 : vector<4x128xf32>
    %31 = arith.mulf %3, %30 : vector<4x128xf32>
    %32 = vector.extract_strided_slice %0 {offsets = [0, 10], sizes = [4, 1], strides = [1, 1]} : vector<4x12xf32> to vector<4x1xf32>
    %33 = vector.broadcast %32 : vector<4x1xf32> to vector<4x128xf32>
    %34 = arith.addf %31, %33 : vector<4x128xf32>
    %c1 = arith.constant 1 : index
    %c0_10 = arith.constant 0 : index
    %c0_11 = arith.constant 0 : index
    %35 = vector.load %arg6[%c1, %c0_10, %c0_11] : memref<3x4x128xf32, #tpu.memory_space<vmem>>, vector<1x4x128xf32>
    %36 = vector.shape_cast %35 : vector<1x4x128xf32> to vector<4x128xf32>
    %37 = vector.shape_cast %34 : vector<4x128xf32> to vector<1x4x128xf32>
    tpu.vector_store %arg6[%c1, %c0_10, %c0_11], %37 {strides = array<i32>} : memref<3x4x128xf32, #tpu.memory_space<vmem>>, vector<1x4x128xf32>,
    %38 = vector.extract_strided_slice %0 {offsets = [0, 6], sizes = [4, 1], strides = [1, 1]} : vector<4x12xf32> to vector<4x1xf32>
    %39 = vector.broadcast %38 : vector<4x1xf32> to vector<4x128xf32>
    %40 = arith.mulf %39, %1 : vector<4x128xf32>
    %41 = vector.extract_strided_slice %0 {offsets = [0, 7], sizes = [4, 1], strides = [1, 1]} : vector<4x12xf32> to vector<4x1xf32>
    %42 = vector.broadcast %41 : vector<4x1xf32> to vector<4x128xf32>
    %43 = arith.mulf %42, %2 : vector<4x128xf32>
    %44 = arith.addf %40, %43 : vector<4x128xf32>
    %45 = vector.extract_strided_slice %0 {offsets = [0, 8], sizes = [4, 1], strides = [1, 1]} : vector<4x12xf32> to vector<4x1xf32>
    %46 = vector.broadcast %45 : vector<4x1xf32> to vector<4x128xf32>
    %47 = arith.addf %44, %46 : vector<4x128xf32>
    %48 = arith.mulf %3, %47 : vector<4x128xf32>
    %49 = vector.extract_strided_slice %0 {offsets = [0, 11], sizes = [4, 1], strides = [1, 1]} : vector<4x12xf32> to vector<4x1xf32>
    %50 = vector.broadcast %49 : vector<4x1xf32> to vector<4x128xf32>
    %51 = arith.addf %48, %50 : vector<4x128xf32>
    %c2 = arith.constant 2 : index
    %c0_12 = arith.constant 0 : index
    %c0_13 = arith.constant 0 : index
    %52 = vector.load %arg6[%c2, %c0_12, %c0_13] : memref<3x4x128xf32, #tpu.memory_space<vmem>>, vector<1x4x128xf32>
    %53 = vector.shape_cast %52 : vector<1x4x128xf32> to vector<4x128xf32>
    %54 = vector.shape_cast %51 : vector<4x128xf32> to vector<1x4x128xf32>
    tpu.vector_store %arg6[%c2, %c0_12, %c0_13], %54 {strides = array<i32>} : memref<3x4x128xf32, #tpu.memory_space<vmem>>, vector<1x4x128xf32>,
    return
  }
  func.func @transform_0(%arg0: i32, %arg1: i32) -> (i32, i32) {
    %c0_i32 = arith.constant 0 : i32
    %c0_i32_0 = arith.constant 0 : i32
    return %arg0, %c0_i32 : i32, i32
  }
  func.func @transform_1(%arg0: i32, %arg1: i32) -> (i32, i32) {
    %c0_i32 = arith.constant 0 : i32
    return %arg0, %arg1 : i32, i32
  }
  func.func @transform_2(%arg0: i32, %arg1: i32) -> (i32, i32) {
    %c0_i32 = arith.constant 0 : i32
    return %arg0, %arg1 : i32, i32
  }
  func.func @transform_3(%arg0: i32, %arg1: i32) -> (i32, i32) {
    %c0_i32 = arith.constant 0 : i32
    return %arg0, %arg1 : i32, i32
  }
  func.func @transform_4(%arg0: i32, %arg1: i32) -> (i32, i32, i32) {
    %c0_i32 = arith.constant 0 : i32
    %c0_i32_0 = arith.constant 0 : i32
    return %c0_i32, %arg0, %arg1 : i32, i32, i32
  }
}

</mosaic_0001>

<llo_original>
// kernel: pinhole_forward_planar.1
$region0: #{pinhole_forward_planar.1}
  #allocation0 [shape = 'u32[]', space=smem, size = 0x4, offset = 0x4, fixed_abs, tag = 'smem constant byte address 0x4 - core index']
  #allocation1 [shape = 'u32[144,128]{1,0:T(1,128)}', space=vmem, size = 0x12000, scoped, tag = 'internal scratch']
  %s0 = inlined_call_operand.vmem [shape: f32[4,12], index: 0, kind: input, shape index: {}]
  %s1 = inlined_call_operand.vmem [shape: f32[4,200], index: 1, kind: input, shape index: {}]
  %s2 = inlined_call_operand.vmem [shape: f32[4,200], index: 2, kind: input, shape index: {}]
  %s3 = inlined_call_operand.vmem [shape: f32[4,200], index: 3, kind: input, shape index: {}]
  %s4 = inlined_call_operand.hbm [shape: f32[3,4,200], index: 4, kind: output, shape index: {}]
  %s5 = sld [smem:[#allocation0]]
  $region49: #{pinhole_forward_planar.1} parent=0
    _
  %s7 = ssub.s32 1, %s5
  %s8 = scalar_select 0, %s7, %s5
  $region1: #{pinhole_forward_planar.1} parent=0
    #allocation2 [shape = 'u8[12288]{0}', space=vmem, size = 0x3000, scoped, tag = 'output window, operand 0']
    #allocation3 [shape = 's32[2]{0}', space=sflag, size = 0x8, scoped, tag = 'scoped memory for pinhole_forward_planar.1']
    %9 = vsyncpa [#allocation3], 0
    %s10 = scalar_lea.sflag [#allocation3], 1
    %11 = vsyncpa %s10, 0
    loop: start=0, step=1, limit=4
    $region2: #{pinhole_forward_planar.1} parent=1 // loop_pre_header
      _
    $region3: #{pinhole_forward_planar.1} parent=1 // loop_header
      %s13 = sphi 0, %s17
      %p14 = scmp.ge.s32.totalorder %s13, 4
      %s20 = sphi 0, %s32
      %s21 = sphi 0, %s28
      %s22 = sphi 0, %s20
      %s23 = sphi 0, %s21
      %s24 = sphi 0, %s22
      %s25 = sphi 0, %s23
      %s35 = sphi 0, %s37
      %s38 = sphi 0, %s35
      %s39 = sphi 0, %s38
      %s55 = sphi 0, %s39
      %s63 = sphi 0, %s65
      %s66 = sphi 0, %s63
      %s67 = sphi 0, %s66
      %s83 = sphi 0, %s67
      %s91 = sphi 0, %s93
      %s94 = sphi 0, %s91
      %s95 = sphi 0, %s94
      %s111 = sphi 0, %s95
      %s119 = sphi 0, %s121
      %s122 = sphi 0, %s119
      %s123 = sphi 0, %s122
      %s139 = sphi 0, %s123
      %s147 = sphi 0, %s149
      %s150 = sphi 0, %s147
      %s151 = sphi 0, %s150
      %s167 = sphi 0, %s151
    $region4: #{pinhole_forward_planar.1} parent=1 // loop_header_branch
      %16 = sbr.rel (%p14) target = $region8
    $region5: #{pinhole_forward_planar.1} parent=1 // loop_body
      %s18 = ssub.s32 %s13, 1
      %s19 = ssub.s32 %s13, 2
      %s26 = sadd.s32 1, %s21
      %p27 = scmp.ge.s32.totalorder %s26, 2
      %s28 = scalar_select %p27, 0, %s26
      %s29 = sadd.s32 1, %s20
      %s30 = scalar_select %p27, %s29, %s20
      %p31 = scmp.ge.s32.totalorder %s30, 1
      %s32 = scalar_select %p31, 0, %s30
      %s33 = ssub.s32 %s20, %s32
      %p34 = scmp.eq.s32.totalorder %s33, 0
      %s36 = sadd.s32 %s35, 1
      %s37 = scalar_select %p34, %s35, %s36
      %p40 = pneg %p34
      %p41 = scmp.eq.s32.totalorder %s13, 1
      %p42 = por %p40, %p41
      %p43 = scmp.ne.s32.totalorder %s35, %s38
      %p44 = scmp.eq.s32.totalorder %s13, 0
      %p45 = por %p43, %p44
      %p46 = scmp.ne.s32.totalorder %s35, %s38
      %p47 = scmp.eq.s32.totalorder %s18, 1
      %p48 = por %p46, %p47
      %p49 = scmp.ne.s32.totalorder %s38, %s39
      %p50 = scmp.eq.s32.totalorder %s18, 0
      %p51 = por %p49, %p50
      %p52 = scmp.ne.s32.totalorder %s38, %s39
      %p53 = scmp.eq.s32.totalorder %s19, 1
      %p54 = por %p52, %p53
      %p56 = scmp.ne.s32.totalorder %s39, %s55
      %p57 = scmp.eq.s32.totalorder %s19, 0
      %p58 = por %p56, %p57
      %s59 = ssub.s32 %s20, %s32
      %s60 = ssub.s32 %s21, %s28
      %s61 = sor.u32 %s59, %s60
      %p62 = scmp.eq.s32.totalorder %s61, 0
      %s64 = sadd.s32 %s63, 1
      %s65 = scalar_select %p62, %s63, %s64
      %p68 = pneg %p62
      %p69 = scmp.eq.s32.totalorder %s13, 1
      %p70 = por %p68, %p69
      %p71 = scmp.ne.s32.totalorder %s63, %s66
      %p72 = scmp.eq.s32.totalorder %s13, 0
      %p73 = por %p71, %p72
      %p74 = scmp.ne.s32.totalorder %s63, %s66
      %p75 = scmp.eq.s32.totalorder %s18, 1
      %p76 = por %p74, %p75
      %p77 = scmp.ne.s32.totalorder %s66, %s67
      %p78 = scmp.eq.s32.totalorder %s18, 0
      %p79 = por %p77, %p78
      %p80 = scmp.ne.s32.totalorder %s66, %s67
      %p81 = scmp.eq.s32.totalorder %s19, 1
      %p82 = por %p80, %p81
      %p84 = scmp.ne.s32.totalorder %s67, %s83
      %p85 = scmp.eq.s32.totalorder %s19, 0
      %p86 = por %p84, %p85
      %s87 = ssub.s32 %s20, %s32
      %s88 = ssub.s32 %s21, %s28
      %s89 = sor.u32 %s87, %s88
      %p90 = scmp.eq.s32.totalorder %s89, 0
      %s92 = sadd.s32 %s91, 1
      %s93 = scalar_select %p90, %s91, %s92
      %p96 = pneg %p90
      %p97 = scmp.eq.s32.totalorder %s13, 1
      %p98 = por %p96, %p97
      %p99 = scmp.ne.s32.totalorder %s91, %s94
      %p100 = scmp.eq.s32.totalorder %s13, 0
      %p101 = por %p99, %p100
      %p102 = scmp.ne.s32.totalorder %s91, %s94
      %p103 = scmp.eq.s32.totalorder %s18, 1
      %p104 = por %p102, %p103
      %p105 = scmp.ne.s32.totalorder %s94, %s95
      %p106 = scmp.eq.s32.totalorder %s18, 0
      %p107 = por %p105, %p106
      %p108 = scmp.ne.s32.totalorder %s94, %s95
      %p109 = scmp.eq.s32.totalorder %s19, 1
      %p110 = por %p108, %p109
      %p112 = scmp.ne.s32.totalorder %s95, %s111
      %p113 = scmp.eq.s32.totalorder %s19, 0
      %p114 = por %p112, %p113
      %s115 = ssub.s32 %s20, %s32
      %s116 = ssub.s32 %s21, %s28
      %s117 = sor.u32 %s115, %s116
      %p118 = scmp.eq.s32.totalorder %s117, 0
      %s120 = sadd.s32 %s119, 1
      %s121 = scalar_select %p118, %s119, %s120
      %p124 = pneg %p118
      %p125 = scmp.eq.s32.totalorder %s13, 1
      %p126 = por %p124, %p125
      %p127 = scmp.ne.s32.totalorder %s119, %s122
      %p128 = scmp.eq.s32.totalorder %s13, 0
      %p129 = por %p127, %p128
      %p130 = scmp.ne.s32.totalorder %s119, %s122
      %p131 = scmp.eq.s32.totalorder %s18, 1
      %p132 = por %p130, %p131
      %p133 = scmp.ne.s32.totalorder %s122, %s123
      %p134 = scmp.eq.s32.totalorder %s18, 0
      %p135 = por %p133, %p134
      %p136 = scmp.ne.s32.totalorder %s122, %s123
      %p137 = scmp.eq.s32.totalorder %s19, 1
      %p138 = por %p136, %p137
      %p140 = scmp.ne.s32.totalorder %s123, %s139
      %p141 = scmp.eq.s32.totalorder %s19, 0
      %p142 = por %p140, %p141
      %s143 = ssub.s32 %s20, %s32
      %s144 = ssub.s32 %s21, %s28
      %s145 = sor.u32 %s143, %s144
      %p146 = scmp.eq.s32.totalorder %s145, 0
      %s148 = sadd.s32 %s147, 1
      %s149 = scalar_select %p146, %s147, %s148
      %p152 = pneg %p146
      %p153 = scmp.eq.s32.totalorder %s13, 1
      %p154 = por %p152, %p153
      %p155 = scmp.ne.s32.totalorder %s147, %s150
      %p156 = scmp.eq.s32.totalorder %s13, 0
      %p157 = por %p155, %p156
      %p158 = scmp.ne.s32.totalorder %s147, %s150
      %p159 = scmp.eq.s32.totalorder %s18, 1
      %p160 = por %p158, %p159
      %p161 = scmp.ne.s32.totalorder %s150, %s151
      %p162 = scmp.eq.s32.totalorder %s18, 0
      %p163 = por %p161, %p162
      %p164 = scmp.ne.s32.totalorder %s150, %s151
      %p165 = scmp.eq.s32.totalorder %s19, 1
      %p166 = por %p164, %p165
      %p168 = scmp.ne.s32.totalorder %s151, %s167
      %p169 = scmp.eq.s32.totalorder %s19, 0
      %p170 = por %p168, %p169
      %p171 = scmp.le.s32.totalorder 1, %s13
      %p172 = scmp.lt.s32.totalorder %s13, 3
      %p173 = pnand %p171, %p172
      %p174 = pneg %p173
      // Predicated region
      $region9: #{pinhole_forward_planar.1} parent=5 // pred_check
        _
      $region10: #{pinhole_forward_planar.1} parent=5 // pred_check_branch
        %176 = sbr.rel (%p173) target = $region12
      $region11: #{pinhole_forward_planar.1} parent=5 // pred_region
        %s177 = ssub.s32 %s13, 1
        // Predicated region
        $region13: #{pinhole_forward_planar.1} parent=11 // pred_check
          %p178 = pneg %p51
        $region14: #{pinhole_forward_planar.1} parent=11 // pred_check_branch
          %180 = sbr.rel (%p178) target = $region16
        $region15: #{pinhole_forward_planar.1} parent=11 // pred_region
          %p181 = scmp.lt.s32.totalorder %s22, 0
          %s182 = scalar_select %p181, %s22, 0
          %s183 = smul.addr %s182, 4
          %s184 = scalar_lea.vmem %s0, %s183
        $region16: #{pinhole_forward_planar.1} parent=11 // pred_fallthru
          _
      $region12: #{pinhole_forward_planar.1} parent=5 // pred_fallthru
        _
      %p185 = scmp.lt.s32.totalorder %s13, 2
      // Predicated region
      $region17: #{pinhole_forward_planar.1} parent=5 // pred_check
        %p186 = pneg %p185
      $region18: #{pinhole_forward_planar.1} parent=5 // pred_check_branch
        %188 = sbr.rel (%p186) target = $region20
      $region19: #{pinhole_forward_planar.1} parent=5 // pred_region
        // Predicated region
        $region21: #{pinhole_forward_planar.1} parent=19 // pred_check
          %p189 = pneg %p73
        $region22: #{pinhole_forward_planar.1} parent=19 // pred_check_branch
          %191 = sbr.rel (%p189) target = $region24
        $region23: #{pinhole_forward_planar.1} parent=19 // pred_region
          %p192 = scmp.lt.s32.totalorder %s20, 0
          %s193 = scalar_select %p192, %s20, 0
          %p194 = scmp.lt.s32.totalorder %s21, 1
          %s195 = scalar_select %p194, %s21, 1
          %s196 = smul.addr %s193, 2
          %s197 = sadd.s32 %s195, %s196
          %s198 = smul.addr %s197, 4
          %s199 = scalar_lea.vmem %s1, %s198
        $region24: #{pinhole_forward_planar.1} parent=19 // pred_fallthru
          _
        // Predicated region
        $region25: #{pinhole_forward_planar.1} parent=19 // pred_check
          %p200 = pneg %p101
        $region26: #{pinhole_forward_planar.1} parent=19 // pred_check_branch
          %202 = sbr.rel (%p200) target = $region28
        $region27: #{pinhole_forward_planar.1} parent=19 // pred_region
          %p203 = scmp.lt.s32.totalorder %s20, 0
          %s204 = scalar_select %p203, %s20, 0
          %p205 = scmp.lt.s32.totalorder %s21, 1
          %s206 = scalar_select %p205, %s21, 1
          %s207 = smul.addr %s204, 2
          %s208 = sadd.s32 %s206, %s207
          %s209 = smul.addr %s208, 4
          %s210 = scalar_lea.vmem %s2, %s209
        $region28: #{pinhole_forward_planar.1} parent=19 // pred_fallthru
          _
        // Predicated region
        $region29: #{pinhole_forward_planar.1} parent=19 // pred_check
          %p211 = pneg %p129
        $region30: #{pinhole_forward_planar.1} parent=19 // pred_check_branch
          %213 = sbr.rel (%p211) target = $region32
        $region31: #{pinhole_forward_planar.1} parent=19 // pred_region
          %p214 = scmp.lt.s32.totalorder %s20, 0
          %s215 = scalar_select %p214, %s20, 0
          %p216 = scmp.lt.s32.totalorder %s21, 1
          %s217 = scalar_select %p216, %s21, 1
          %s218 = smul.addr %s215, 2
          %s219 = sadd.s32 %s217, %s218
          %s220 = smul.addr %s219, 4
          %s221 = scalar_lea.vmem %s3, %s220
        $region32: #{pinhole_forward_planar.1} parent=19 // pred_fallthru
          _
      $region20: #{pinhole_forward_planar.1} parent=5 // pred_fallthru
        _
      %p222 = scmp.le.s32.totalorder 1, %s13
      %p223 = scmp.lt.s32.totalorder %s13, 3
      %p224 = pnand %p222, %p223
      %p225 = pneg %p224
      // Predicated region
      $region33: #{pinhole_forward_planar.1} parent=5 // pred_check
        _
      $region34: #{pinhole_forward_planar.1} parent=5 // pred_check_branch
        %227 = sbr.rel (%p224) target = $region36
      $region35: #{pinhole_forward_planar.1} parent=5 // pred_region
        %s228 = ssub.s32 %s13, 1
        %p229 = scmp.lt.s32.totalorder %s22, 0
        %s230 = scalar_select %p229, %s22, 0
        %s231 = smul.addr %s230, 4
        %s232 = scalar_lea.vmem %s0, %s231
        %p233 = pneg %p51
        %p234 = pneg %p48
        %p235 = scmp.lt.s32.totalorder %s22, 0
        %s236 = scalar_select %p235, %s22, 0
        %p237 = scmp.lt.s32.totalorder %s23, 1
        %s238 = scalar_select %p237, %s23, 1
        %s239 = smul.addr %s236, 2
        %s240 = sadd.s32 %s238, %s239
        %s241 = smul.addr %s240, 4
        %s242 = scalar_lea.vmem %s1, %s241
        %p243 = pneg %p79
        %p244 = pneg %p76
        %p245 = scmp.lt.s32.totalorder %s22, 0
        %s246 = scalar_select %p245, %s22, 0
        %p247 = scmp.lt.s32.totalorder %s23, 1
        %s248 = scalar_select %p247, %s23, 1
        %s249 = smul.addr %s246, 2
        %s250 = sadd.s32 %s248, %s249
        %s251 = smul.addr %s250, 4
        %s252 = scalar_lea.vmem %s2, %s251
        %p253 = pneg %p107
        %p254 = pneg %p104
        %p255 = scmp.lt.s32.totalorder %s22, 0
        %s256 = scalar_select %p255, %s22, 0
        %p257 = scmp.lt.s32.totalorder %s23, 1
        %s258 = scalar_select %p257, %s23, 1
        %s259 = smul.addr %s256, 2
        %s260 = sadd.s32 %s258, %s259
        %s261 = smul.addr %s260, 4
        %s262 = scalar_lea.vmem %s3, %s261
        %p263 = pneg %p135
        %p264 = pneg %p132
        %p265 = pneg %p163
        %p266 = pneg %p160
        %s267 = sand.u32 %s150, 1
        %s268 = scalar_lea.sflag [#allocation3], %s267
        %s269 = sand.u32 %s150, 1
        %s270 = smul.addr %s269, 12
        %s271 = scalar_lea.vmem [#allocation2], %s270
        %p272 = scmp.lt.s32.totalorder %s22, 0
        %s273 = scalar_select %p272, %s22, 0
        %s274 = smul.addr %s273, 4
        %s275 = scalar_lea.vmem %s0, %s274
        %p276 = scmp.lt.s32.totalorder %s22, 0
        %s277 = scalar_select %p276, %s22, 0
        %p278 = scmp.lt.s32.totalorder %s23, 1
        %s279 = scalar_select %p278, %s23, 1
        %s280 = smul.addr %s277, 2
        %s281 = sadd.s32 %s279, %s280
        %s282 = smul.addr %s281, 4
        %s283 = scalar_lea.vmem %s1, %s282
        %p284 = scmp.lt.s32.totalorder %s22, 0
        %s285 = scalar_select %p284, %s22, 0
        %p286 = scmp.lt.s32.totalorder %s23, 1
        %s287 = scalar_select %p286, %s23, 1
        %s288 = smul.addr %s285, 2
        %s289 = sadd.s32 %s287, %s288
        %s290 = smul.addr %s289, 4
        %s291 = scalar_lea.vmem %s2, %s290
        %p292 = scmp.lt.s32.totalorder %s22, 0
        %s293 = scalar_select %p292, %s22, 0
        %p294 = scmp.lt.s32.totalorder %s23, 1
        %s295 = scalar_select %p294, %s23, 1
        %s296 = smul.addr %s293, 2
        %s297 = sadd.s32 %s295, %s296
        %s298 = smul.addr %s297, 4
        %s299 = scalar_lea.vmem %s3, %s298
        %v300 = vld [vmem:[%s275] sm:$0xf]
        %v301 = vld [vmem:[%s283] sm:$0xf]
        %v302 = vld [vmem:[%s291] sm:$0xf]
        %v303 = vld [vmem:[%s299] sm:$0xf]
        %305 = vset.pattern.permute.xlu0 0
        %306 = vperm.xlu0 %305, %v300
        %v307 = vpop.permute.xlu0 %306
        %v309 = vmul.f32 %v307, %v301
        %310 = vset.pattern.permute.xlu0 1
        %311 = vperm.xlu0 %310, %v300
        %v312 = vpop.permute.xlu0 %311
        %v314 = vmul.f32 %v312, %v302
        %v315 = vadd.f32 %v309, %v314
        %316 = vset.pattern.permute.xlu0 2
        %317 = vperm.xlu0 %316, %v300
        %v318 = vpop.permute.xlu0 %317
        %v320 = vadd.f32 %v315, %v318
        %v321 = vmul.f32 %v303, %v320
        %322 = vset.pattern.permute.xlu0 9
        %323 = vperm.xlu0 %322, %v300
        %v324 = vpop.permute.xlu0 %323
        %v326 = vadd.f32 %v321, %v324
        %327 = vst [vmem:[%s271] sm:$0xf] %v326
        %328 = vset.pattern.permute.xlu0 3
        %329 = vperm.xlu0 %328, %v300
        %v330 = vpop.permute.xlu0 %329
        %v332 = vmul.f32 %v330, %v301
        %333 = vset.pattern.permute.xlu0 4
        %334 = vperm.xlu0 %333, %v300
        %v335 = vpop.permute.xlu0 %334
        %v337 = vmul.f32 %v335, %v302
        %v338 = vadd.f32 %v332, %v337
        %339 = vset.pattern.permute.xlu0 5
        %340 = vperm.xlu0 %339, %v300
        %v341 = vpop.permute.xlu0 %340
        %v343 = vadd.f32 %v338, %v341
        %v344 = vmul.f32 %v303, %v343
        %345 = vset.pattern.permute.xlu0 10
        %346 = vperm.xlu0 %345, %v300
        %v347 = vpop.permute.xlu0 %346
        %v349 = vadd.f32 %v344, %v347
        %s350 = scalar_lea.vmem %s271, 4 [#allocation2]
        %351 = vst [vmem:[%s350] sm:$0xf] %v349
        %352 = vset.pattern.permute.xlu0 6
        %353 = vperm.xlu0 %352, %v300
        %v354 = vpop.permute.xlu0 %353
        %v356 = vmul.f32 %v354, %v301
        %357 = vset.pattern.permute.xlu0 7
        %358 = vperm.xlu0 %357, %v300
        %v359 = vpop.permute.xlu0 %358
        %v361 = vmul.f32 %v359, %v302
        %v362 = vadd.f32 %v356, %v361
        %363 = vset.pattern.permute.xlu0 8
        %364 = vperm.xlu0 %363, %v300
        %v365 = vpop.permute.xlu0 %364
        %v367 = vadd.f32 %v362, %v365
        %v368 = vmul.f32 %v303, %v367
        %369 = vset.pattern.permute.xlu0 11
        %370 = vperm.xlu0 %369, %v300
        %v371 = vpop.permute.xlu0 %370
        %v373 = vadd.f32 %v368, %v371
        %s374 = scalar_lea.vmem %s271, 8 [#allocation2]
        %375 = vst [vmem:[%s374] sm:$0xf] %v373
        %s376 = sand.u32 %s150, 1
        %s377 = scalar_lea.sflag [#allocation3], %s376
        %s378 = sand.u32 %s150, 1
        %s379 = smul.addr %s378, 12
        %s380 = scalar_lea.vmem [#allocation2], %s379
        // Predicated region
        $region37: #{pinhole_forward_planar.1} parent=35 // pred_check
          %p381 = pneg %p160
        $region38: #{pinhole_forward_planar.1} parent=35 // pred_check_branch
          %383 = sbr.rel (%p381) target = $region40
        $region39: #{pinhole_forward_planar.1} parent=35 // pred_region
          %s385 = ssub.s32 192, 192
          %386 = vsyncadd %s377, %s385
          %s387 = smul.addr %s22, 2
          %s388 = sadd.s32 %s23, %s387
          %s389 = smul.addr %s388, 64
          %s390 = scalar_lea.hbm %s4, %s389
          %s391 = sshll.u32 %s380, 4
          %s392 = int_to_ptr.vmem [resolvable:$true] %s391
          %397 = dma.vmem_to_hbm [thread:$0]  %s392, 192, %s390, %s377, 64, 128, 4
        $region40: #{pinhole_forward_planar.1} parent=35 // pred_fallthru
          _
      $region36: #{pinhole_forward_planar.1} parent=5 // pred_fallthru
        _
      %p398 = scmp.le.s32.totalorder 2, %s13
      // Predicated region
      $region41: #{pinhole_forward_planar.1} parent=5 // pred_check
        %p399 = pneg %p398
      $region42: #{pinhole_forward_planar.1} parent=5 // pred_check_branch
        %401 = sbr.rel (%p399) target = $region44
      $region43: #{pinhole_forward_planar.1} parent=5 // pred_region
        %s402 = ssub.s32 %s13, 2
        // Predicated region
        $region45: #{pinhole_forward_planar.1} parent=43 // pred_check
          %p403 = pneg %p166
        $region46: #{pinhole_forward_planar.1} parent=43 // pred_check_branch
          %405 = sbr.rel (%p403) target = $region48
        $region47: #{pinhole_forward_planar.1} parent=43 // pred_region
          %s406 = sand.u32 %s151, 1
          %s407 = scalar_lea.sflag [#allocation3], %s406
          %s408 = sand.u32 %s151, 1
          %s409 = smul.addr %s408, 12
          %s410 = scalar_lea.vmem [#allocation2], %s409
          %411 = dma.done %s407, 192
        $region48: #{pinhole_forward_planar.1} parent=43 // pred_fallthru
          _
      $region44: #{pinhole_forward_planar.1} parent=5 // pred_fallthru
        _
    $region6: #{pinhole_forward_planar.1} parent=1 // loop_footer
      %s17 = sadd.s32 1, %s13
    $region7: #{pinhole_forward_planar.1} parent=1 // loop_footer_branch
      %12 = sbr.rel target = $region3
    $region8: #{pinhole_forward_planar.1} parent=1 // loop_exit
      _
    %412 = vsyncpa [#allocation3], 1
    %s413 = scalar_lea.sflag [#allocation3], 1
    %414 = vsyncpa %s413, 1

</llo_original>
